<compile_context>
chip_gen: v5e
topology: v5e:2x2
jax: 0.10.0
libtpu: 0.0.40
codegen_flags: <defaults>
</compile_context>

<pallas_src>
import functools

import jax
import jax.numpy as jnp
from jax import lax
from jax.experimental import pallas as pl
from jax.experimental.pallas import tpu as pltpu


def mlp_kernel(x_ref, w1_ref, w2_ref, w3_ref, o_ref, *,
               sub_b, n_sub, compute_dtype, precision):
    """One grid step: process block_b = n_sub * sub_b rows of x."""

    def body(i, carry):
        r = pl.multiple_of(i * sub_b, sub_b)
        # Cast the activation chunk in-kernel (no wrapper-side cast pass).
        xs = x_ref[pl.ds(r, sub_b), :].astype(compute_dtype)
        # Weights are VMEM-resident (constant index map, DMA'd once); re-read
        # them per chunk rather than pinning them in vregs.
        h1 = jnp.maximum(
            jnp.dot(xs, w1_ref[...],
                    preferred_element_type=jnp.float32, precision=precision),
            0.0)
        h2 = jnp.maximum(
            jnp.dot(h1.astype(compute_dtype), w2_ref[...],
                    preferred_element_type=jnp.float32, precision=precision),
            0.0)
        y = jnp.dot(h2.astype(compute_dtype), w3_ref[...],
                    preferred_element_type=jnp.float32, precision=precision)
        o_ref[pl.ds(r, sub_b), :] = y.astype(o_ref.dtype)
        return carry

    if n_sub == 1:
        body(0, 0)
    else:
        # Static trip count; cap unroll at 2 to bound f32-intermediate vreg use.
        lax.fori_loop(0, n_sub, body, 0, unroll=2)


def _physical_vmem_bytes():
    try:
        return int(pltpu.get_tpu_info().vmem_capacity_bytes)
    except Exception:
        return 64 << 20  # smallest per-core VMEM across v5e/v6e/v7x


def prepare_mlp_weights(w1, w2, w3, compute_dtype=jnp.bfloat16):
    """One-time cast of the (d_in, d_out) weights to the kernel compute dtype.

    Do this once at parameter-load time so the per-call path has no extra
    XLA pad/cast passes.
    """
    return tuple(jnp.asarray(w, dtype=compute_dtype) for w in (w1, w2, w3))


@functools.partial(jax.jit, static_argnames=("max_block_rows", "compute_dtype"))
def mlp_block(x, w1, w2, w3, *, max_block_rows=1024,
              compute_dtype=jnp.bfloat16):
    """Fused MLPBlock forward.

    x  : (B, d0); kept in its own dtype in HBM, cast in-kernel.
    w_i: (d_in_i, d_out_i) -- transpose of PyTorch nn.Linear's (out, in)
         layout; ideally already cast via prepare_mlp_weights().
    compute_dtype: bf16 (fast, default) or float32 (exact parity with the
         f32 PyTorch module; lowered with precision=HIGHEST).
    Returns (B, d3) in x.dtype.
    """
    B, d0 = x.shape
    d1, d2, d3 = w1.shape[1], w2.shape[1], w3.shape[1]
    assert w1.shape[0] == d0 and w2.shape[0] == d1 and w3.shape[0] == d2
    out_dtype = x.dtype

    compute_dtype = jnp.dtype(compute_dtype)
    precision = (lax.Precision.HIGHEST if compute_dtype == jnp.float32
                 else lax.Precision.DEFAULT)

    # Row tiling: sub_b-row compute chunks inside a block_b-row DMA tile.
    # block_b is always a multiple of sub_b and never exceeds B, so every
    # in-kernel pl.ds stays inside the VMEM block; the ragged batch tail is
    # handled by Pallas' partial last block (masked output DMA).
    sub_b = 128
    if B <= sub_b:
        sub_b = B
        block_b = B
    else:
        block_b = min(max_block_rows, (B // sub_b) * sub_b)
    n_sub = block_b // sub_b
    n_blocks = pl.cdiv(B, block_b)

    # Per-step VMEM estimate: double-buffered x/out tiles, resident weights
    # (x2 buffers), plus live f32 intermediates of one chunk. Only raise the
    # scoped limit when needed; cap well below physical VMEM per TensorCore.
    x_b = jnp.dtype(x.dtype).itemsize
    o_b = jnp.dtype(out_dtype).itemsize
    w_b = jnp.dtype(w1.dtype).itemsize
    vmem_est = (2 * block_b * d0 * x_b
                + 2 * block_b * d3 * o_b
                + 2 * (d0 * d1 + d1 * d2 + d2 * d3) * w_b
                + 4 * sub_b * max(d1, d2, d3) * 4)
    cp_kwargs = dict(dimension_semantics=("parallel",))
    if vmem_est > 12 * 2**20:
        cp_kwargs["vmem_limit_bytes"] = min(
            int(1.5 * vmem_est) + (4 << 20),
            int(0.8 * _physical_vmem_bytes()))

    kernel = functools.partial(mlp_kernel, sub_b=sub_b, n_sub=n_sub,
                               compute_dtype=compute_dtype,
                               precision=precision)

    return pl.pallas_call(
        kernel,
        out_shape=jax.ShapeDtypeStruct((B, d3), out_dtype),
        grid=(n_blocks,),
        in_specs=[
            pl.BlockSpec((block_b, d0), lambda i: (i, 0)),   # activation tile
            pl.BlockSpec((d0, d1), lambda i: (0, 0)),        # resident weights
            pl.BlockSpec((d1, d2), lambda i: (0, 0)),
            pl.BlockSpec((d2, d3), lambda i: (0, 0)),
        ],
        out_specs=pl.BlockSpec((block_b, d3), lambda i: (i, 0)),
        compiler_params=pltpu.CompilerParams(**cp_kwargs),
    )(x, w1, w2, w3)


def kaiming_normal(key, fan_in, fan_out, dtype=jnp.float32):
    # PyTorch kaiming_normal_ default (mode='fan_in', a=0): std = sqrt(2/fan_in).
    std = jnp.sqrt(2.0 / fan_in).astype(dtype)
    # (d_in, d_out) layout = transpose of PyTorch's (out, in).
    return std * jax.random.normal(key, (fan_in, fan_out), dtype=dtype)


if __name__ == "__main__":
    # layer_sizes = [32, 64, 64, 16]; batch=300 exercises the n_sub=2 inner
    # loop, a 2-block grid, and the ragged (masked) last block.
    layer_sizes = (32, 64, 64, 16)
    batch = 300

    key = jax.random.PRNGKey(0)
    kx, k1, k2, k3 = jax.random.split(key, 4)
    x = jax.random.normal(kx, (batch, layer_sizes[0]), dtype=jnp.float32)
    w1 = kaiming_normal(k1, layer_sizes[0], layer_sizes[1])
    w2 = kaiming_normal(k2, layer_sizes[1], layer_sizes[2])
    w3 = kaiming_normal(k3, layer_sizes[2], layer_sizes[3])

    # --- default bf16-compute path (weights pre-cast once, off the hot path) ---
    w1b, w2b, w3b = prepare_mlp_weights(w1, w2, w3, jnp.bfloat16)
    out = jax.block_until_ready(mlp_block(x, w1b, w2b, w3b))
    assert out.shape == (batch, layer_sizes[3]) and out.dtype == x.dtype

    # Reference 1: same bf16-input / f32-accumulate math as the kernel (tight).
    cd = jnp.bfloat16
    ref = jnp.maximum(jnp.dot(x.astype(cd), w1b,
                              preferred_element_type=jnp.float32), 0.0)
    ref = jnp.maximum(jnp.dot(ref.astype(cd), w2b,
                              preferred_element_type=jnp.float32), 0.0)
    ref = jnp.dot(ref.astype(cd), w3b,
                  preferred_element_type=jnp.float32).astype(x.dtype)
    assert jnp.allclose(out, ref, atol=5e-3, rtol=5e-3), \
        float(jnp.max(jnp.abs(out - ref)))

    # Reference 2: the original full-f32 module forward (loose tol for bf16).
    ref32 = jnp.maximum(x @ w1, 0.0)
    ref32 = jnp.maximum(ref32 @ w2, 0.0)
    ref32 = ref32 @ w3
    assert jnp.allclose(out, ref32, atol=1e-1, rtol=5e-2), \
        float(jnp.max(jnp.abs(out - ref32)))

    # --- explicit f32-parity path (documented opt-in) ---
    out32 = jax.block_until_ready(
        mlp_block(x, w1, w2, w3, compute_dtype=jnp.float32))
    refh = jnp.maximum(jnp.dot(x, w1, precision=lax.Precision.HIGHEST), 0.0)
    refh = jnp.maximum(jnp.dot(refh, w2, precision=lax.Precision.HIGHEST), 0.0)
    refh = jnp.dot(refh, w3, precision=lax.Precision.HIGHEST)
    assert jnp.allclose(out32, refh, atol=1e-4, rtol=1e-4), \
        float(jnp.max(jnp.abs(out32 - refh)))

    print("KERNEL_OK")
</pallas_src>

<mosaic_0001>
module attributes {stable_mosaic.version = 11 : i64} {
  func.func @mlp_kernel(%arg0: i32, %arg1: memref<256x32xf32, #tpu.memory_space<vmem>>, %arg2: memref<32x64xbf16, #tpu.memory_space<vmem>>, %arg3: memref<64x64xbf16, #tpu.memory_space<vmem>>, %arg4: memref<64x16xbf16, #tpu.memory_space<vmem>>, %arg5: memref<256x16xf32, #tpu.memory_space<vmem>>) attributes {dimension_semantics = [#tpu.dimension_semantics<parallel>], iteration_bounds = array<i64: 2>, scalar_prefetch = 0 : i64, scratch_operands = 0 : i64, tpu.core_type = #tpu.core_type<tc>, window_params = [{transform_indices = @transform_0, window_bounds = array<i64: 256, 32>}, {pipeline_mode = #tpu.pipeline_mode<synchronous>, transform_indices = @transform_1, window_bounds = array<i64: 32, 64>}, {pipeline_mode = #tpu.pipeline_mode<synchronous>, transform_indices = @transform_2, window_bounds = array<i64: 64, 64>}, {pipeline_mode = #tpu.pipeline_mode<synchronous>, transform_indices = @transform_3, window_bounds = array<i64: 64, 16>}, {transform_indices = @transform_4, window_bounds = array<i64: 256, 16>}]} {
    %c0_i32 = arith.constant 0 : i32
    %c128_i32 = arith.constant 128 : i32
    %0 = arith.muli %c0_i32, %c128_i32 : i32
    %1 = tpu.assume_multiple %0, 128 : i32
    %2 = arith.index_cast %1 : i32 to index
    %c0 = arith.constant 0 : index
    %3 = vector.load %arg1[%2, %c0] : memref<256x32xf32, #tpu.memory_space<vmem>>, vector<128x32xf32>
    %4 = arith.truncf %3 : vector<128x32xf32> to vector<128x32xbf16>
    %c0_0 = arith.constant 0 : index
    %c0_1 = arith.constant 0 : index
    %5 = vector.load %arg2[%c0_0, %c0_1] : memref<32x64xbf16, #tpu.memory_space<vmem>>, vector<32x64xbf16>
    %cst = arith.constant dense<0.000000e+00> : vector<128x64xf32>
    %6 = tpu.matmul %4, %5, %cst {dimension_numbers = #tpu.dot_dimension_numbers<[1], [0], [0], [1], [0, 0, 1, 1], [], []>} : vector<128x32xbf16>, vector<32x64xbf16>, vector<128x64xf32> -> vector<128x64xf32>
    %cst_2 = arith.constant 0.000000e+00 : f32
    %7 = vector.broadcast %cst_2 : f32 to vector<128x64xf32>
    %8 = arith.maximumf %6, %7 : vector<128x64xf32>
    %9 = arith.truncf %8 : vector<128x64xf32> to vector<128x64xbf16>
    %c0_3 = arith.constant 0 : index
    %c0_4 = arith.constant 0 : index
    %10 = vector.load %arg3[%c0_3, %c0_4] : memref<64x64xbf16, #tpu.memory_space<vmem>>, vector<64x64xbf16>
    %cst_5 = arith.constant dense<0.000000e+00> : vector<128x64xf32>
    %11 = tpu.matmul %9, %10, %cst_5 {dimension_numbers = #tpu.dot_dimension_numbers<[1], [0], [0], [1], [0, 0, 1, 1], [], []>} : vector<128x64xbf16>, vector<64x64xbf16>, vector<128x64xf32> -> vector<128x64xf32>
    %cst_6 = arith.constant 0.000000e+00 : f32
    %12 = vector.broadcast %cst_6 : f32 to vector<128x64xf32>
    %13 = arith.maximumf %11, %12 : vector<128x64xf32>
    %14 = arith.truncf %13 : vector<128x64xf32> to vector<128x64xbf16>
    %c0_7 = arith.constant 0 : index
    %c0_8 = arith.constant 0 : index
    %15 = vector.load %arg4[%c0_7, %c0_8] : memref<64x16xbf16, #tpu.memory_space<vmem>>, vector<64x16xbf16>
    %cst_9 = arith.constant dense<0.000000e+00> : vector<128x16xf32>
    %16 = tpu.matmul %14, %15, %cst_9 {dimension_numbers = #tpu.dot_dimension_numbers<[1], [0], [0], [1], [0, 0, 1, 1], [], []>} : vector<128x64xbf16>, vector<64x16xbf16>, vector<128x16xf32> -> vector<128x16xf32>
    %17 = arith.index_cast %1 : i32 to index
    %c0_10 = arith.constant 0 : index
    %18 = vector.load %arg5[%17, %c0_10] : memref<256x16xf32, #tpu.memory_space<vmem>>, vector<128x16xf32>
    tpu.vector_store %arg5[%17, %c0_10], %16 {strides = array<i32>} : memref<256x16xf32, #tpu.memory_space<vmem>>, vector<128x16xf32>,
    %c1_i32 = arith.constant 1 : i32
    %c128_i32_11 = arith.constant 128 : i32
    %19 = arith.muli %c1_i32, %c128_i32_11 : i32
    %20 = tpu.assume_multiple %19, 128 : i32
    %21 = arith.index_cast %20 : i32 to index
    %c0_12 = arith.constant 0 : index
    %22 = vector.load %arg1[%21, %c0_12] : memref<256x32xf32, #tpu.memory_space<vmem>>, vector<128x32xf32>
    %23 = arith.truncf %22 : vector<128x32xf32> to vector<128x32xbf16>
    %c0_13 = arith.constant 0 : index
    %c0_14 = arith.constant 0 : index
    %24 = vector.load %arg2[%c0_13, %c0_14] : memref<32x64xbf16, #tpu.memory_space<vmem>>, vector<32x64xbf16>
    %cst_15 = arith.constant dense<0.000000e+00> : vector<128x64xf32>
    %25 = tpu.matmul %23, %24, %cst_15 {dimension_numbers = #tpu.dot_dimension_numbers<[1], [0], [0], [1], [0, 0, 1, 1], [], []>} : vector<128x32xbf16>, vector<32x64xbf16>, vector<128x64xf32> -> vector<128x64xf32>
    %cst_16 = arith.constant 0.000000e+00 : f32
    %26 = vector.broadcast %cst_16 : f32 to vector<128x64xf32>
    %27 = arith.maximumf %25, %26 : vector<128x64xf32>
    %28 = arith.truncf %27 : vector<128x64xf32> to vector<128x64xbf16>
    %c0_17 = arith.constant 0 : index
    %c0_18 = arith.constant 0 : index
    %29 = vector.load %arg3[%c0_17, %c0_18] : memref<64x64xbf16, #tpu.memory_space<vmem>>, vector<64x64xbf16>
    %cst_19 = arith.constant dense<0.000000e+00> : vector<128x64xf32>
    %30 = tpu.matmul %28, %29, %cst_19 {dimension_numbers = #tpu.dot_dimension_numbers<[1], [0], [0], [1], [0, 0, 1, 1], [], []>} : vector<128x64xbf16>, vector<64x64xbf16>, vector<128x64xf32> -> vector<128x64xf32>
    %cst_20 = arith.constant 0.000000e+00 : f32
    %31 = vector.broadcast %cst_20 : f32 to vector<128x64xf32>
    %32 = arith.maximumf %30, %31 : vector<128x64xf32>
    %33 = arith.truncf %32 : vector<128x64xf32> to vector<128x64xbf16>
    %c0_21 = arith.constant 0 : index
    %c0_22 = arith.constant 0 : index
    %34 = vector.load %arg4[%c0_21, %c0_22] : memref<64x16xbf16, #tpu.memory_space<vmem>>, vector<64x16xbf16>
    %cst_23 = arith.constant dense<0.000000e+00> : vector<128x16xf32>
    %35 = tpu.matmul %33, %34, %cst_23 {dimension_numbers = #tpu.dot_dimension_numbers<[1], [0], [0], [1], [0, 0, 1, 1], [], []>} : vector<128x64xbf16>, vector<64x16xbf16>, vector<128x16xf32> -> vector<128x16xf32>
    %36 = arith.index_cast %20 : i32 to index
    %c0_24 = arith.constant 0 : index
    %37 = vector.load %arg5[%36, %c0_24] : memref<256x16xf32, #tpu.memory_space<vmem>>, vector<128x16xf32>
    tpu.vector_store %arg5[%36, %c0_24], %35 {strides = array<i32>} : memref<256x16xf32, #tpu.memory_space<vmem>>, vector<128x16xf32>,
    %c2_i32 = arith.constant 2 : i32
    return
  }
  func.func @transform_0(%arg0: i32) -> (i32, i32) {
    %c0_i32 = arith.constant 0 : i32
    %c0_i32_0 = arith.constant 0 : i32
    return %arg0, %c0_i32 : i32, i32
  }
  func.func @transform_1(%arg0: i32) -> (i32, i32) {
    %c0_i32 = arith.constant 0 : i32
    %c0_i32_0 = arith.constant 0 : i32
    %c0_i32_1 = arith.constant 0 : i32
    return %c0_i32, %c0_i32_0 : i32, i32
  }
  func.func @transform_2(%arg0: i32) -> (i32, i32) {
    %c0_i32 = arith.constant 0 : i32
    %c0_i32_0 = arith.constant 0 : i32
    %c0_i32_1 = arith.constant 0 : i32
    return %c0_i32, %c0_i32_0 : i32, i32
  }
  func.func @transform_3(%arg0: i32) -> (i32, i32) {
    %c0_i32 = arith.constant 0 : i32
    %c0_i32_0 = arith.constant 0 : i32
    %c0_i32_1 = arith.constant 0 : i32
    return %c0_i32, %c0_i32_0 : i32, i32
  }
  func.func @transform_4(%arg0: i32) -> (i32, i32) {
    %c0_i32 = arith.constant 0 : i32
    %c0_i32_0 = arith.constant 0 : i32
    return %arg0, %c0_i32 : i32, i32
  }
}

</mosaic_0001>

<llo_original>
// kernel: mlp_block.1
$region0: #{mlp_block.1}
  #allocation0 [shape = 'u32[]', space=smem, size = 0x4, offset = 0x4, fixed_abs, tag = 'smem constant byte address 0x4 - core index']
  #allocation1 [shape = 'u32[72,128]{1,0:T(1,128)}', space=vmem, size = 0x9000, scoped, tag = 'internal scratch']
  %s0 = inlined_call_operand.vmem [shape: f32[300,32], index: 0, kind: input, shape index: {}]
  %s1 = inlined_call_operand.vmem [shape: bf16[32,64], index: 1, kind: input, shape index: {}]
  %s2 = inlined_call_operand.vmem [shape: bf16[64,64], index: 2, kind: input, shape index: {}]
  %s3 = inlined_call_operand.vmem [shape: bf16[64,16], index: 3, kind: input, shape index: {}]
  %s4 = inlined_call_operand.vmem [shape: f32[300,16], index: 4, kind: output, shape index: {}]
  %s5 = sld [smem:[#allocation0]]
  $region97: #{mlp_block.1} parent=0
    _
  %s7 = ssub.s32 1, %s5
  %s8 = scalar_select 0, %s7, %s5
  $region1: #{mlp_block.1} parent=0
    #allocation2 [shape = 'u8[262144]{0}', space=vmem, size = 0x40000, scoped, tag = 'output window, operand 0']
    loop: start=0, step=1, limit=4
    $region2: #{mlp_block.1} parent=1 // loop_pre_header
      _
    $region3: #{mlp_block.1} parent=1 // loop_header
      %s10 = sphi 0, %s14
      %p11 = scmp.ge.s32.totalorder %s10, 4
      %s20 = sphi 0, %s22
      %s23 = sphi 0, %s20
      %s24 = sphi 0, %s23
      %s40 = sphi 0, %s24
      %s44 = sphi 0, %s44
      %s46 = sphi 0, %s44
      %s47 = sphi 0, %s46
      %s61 = sphi 0, %s47
      %s65 = sphi 0, %s65
      %s67 = sphi 0, %s65
      %s68 = sphi 0, %s67
      %s82 = sphi 0, %s68
      %s86 = sphi 0, %s86
      %s88 = sphi 0, %s86
      %s89 = sphi 0, %s88
      %s103 = sphi 0, %s89
      %s109 = sphi 0, %s111
      %s112 = sphi 0, %s109
      %s113 = sphi 0, %s112
      %s129 = sphi 0, %s113
    $region4: #{mlp_block.1} parent=1 // loop_header_branch
      %13 = sbr.rel (%p11) target = $region8
    $region5: #{mlp_block.1} parent=1 // loop_body
      %s15 = ssub.s32 %s10, 1
      %s16 = ssub.s32 %s10, 2
      %s17 = sadd.s32 %s10, 1
      %s18 = ssub.s32 %s10, %s17
      %p19 = scmp.eq.s32.totalorder %s18, 0
      %s21 = sadd.s32 %s20, 1
      %s22 = scalar_select %p19, %s20, %s21
      %p25 = pneg %p19
      %p26 = scmp.eq.s32.totalorder %s10, 1
      %p27 = por %p25, %p26
      %p28 = scmp.ne.s32.totalorder %s20, %s23
      %p29 = scmp.eq.s32.totalorder %s10, 0
      %p30 = por %p28, %p29
      %p31 = scmp.ne.s32.totalorder %s20, %s23
      %p32 = scmp.eq.s32.totalorder %s15, 1
      %p33 = por %p31, %p32
      %p34 = scmp.ne.s32.totalorder %s23, %s24
      %p35 = scmp.eq.s32.totalorder %s15, 0
      %p36 = por %p34, %p35
      %p37 = scmp.ne.s32.totalorder %s23, %s24
      %p38 = scmp.eq.s32.totalorder %s16, 1
      %p39 = por %p37, %p38
      %p41 = scmp.ne.s32.totalorder %s24, %s40
      %p42 = scmp.eq.s32.totalorder %s16, 0
      %p43 = por %p41, %p42
      %s45 = sadd.s32 %s44, 1
      %p48 = scmp.eq.s32.totalorder %s10, 1
      %p49 = scmp.ne.s32.totalorder %s44, %s46
      %p50 = scmp.eq.s32.totalorder %s10, 0
      %p51 = por %p49, %p50
      %p52 = scmp.ne.s32.totalorder %s44, %s46
      %p53 = scmp.eq.s32.totalorder %s15, 1
      %p54 = por %p52, %p53
      %p55 = scmp.ne.s32.totalorder %s46, %s47
      %p56 = scmp.eq.s32.totalorder %s15, 0
      %p57 = por %p55, %p56
      %p58 = scmp.ne.s32.totalorder %s46, %s47
      %p59 = scmp.eq.s32.totalorder %s16, 1
      %p60 = por %p58, %p59
      %p62 = scmp.ne.s32.totalorder %s47, %s61
      %p63 = scmp.eq.s32.totalorder %s16, 0
      %p64 = por %p62, %p63
      %s66 = sadd.s32 %s65, 1
      %p69 = scmp.eq.s32.totalorder %s10, 1
      %p70 = scmp.ne.s32.totalorder %s65, %s67
      %p71 = scmp.eq.s32.totalorder %s10, 0
      %p72 = por %p70, %p71
      %p73 = scmp.ne.s32.totalorder %s65, %s67
      %p74 = scmp.eq.s32.totalorder %s15, 1
      %p75 = por %p73, %p74
      %p76 = scmp.ne.s32.totalorder %s67, %s68
      %p77 = scmp.eq.s32.totalorder %s15, 0
      %p78 = por %p76, %p77
      %p79 = scmp.ne.s32.totalorder %s67, %s68
      %p80 = scmp.eq.s32.totalorder %s16, 1
      %p81 = por %p79, %p80
      %p83 = scmp.ne.s32.totalorder %s68, %s82
      %p84 = scmp.eq.s32.totalorder %s16, 0
      %p85 = por %p83, %p84
      %s87 = sadd.s32 %s86, 1
      %p90 = scmp.eq.s32.totalorder %s10, 1
      %p91 = scmp.ne.s32.totalorder %s86, %s88
      %p92 = scmp.eq.s32.totalorder %s10, 0
      %p93 = por %p91, %p92
      %p94 = scmp.ne.s32.totalorder %s86, %s88
      %p95 = scmp.eq.s32.totalorder %s15, 1
      %p96 = por %p94, %p95
      %p97 = scmp.ne.s32.totalorder %s88, %s89
      %p98 = scmp.eq.s32.totalorder %s15, 0
      %p99 = por %p97, %p98
      %p100 = scmp.ne.s32.totalorder %s88, %s89
      %p101 = scmp.eq.s32.totalorder %s16, 1
      %p102 = por %p100, %p101
      %p104 = scmp.ne.s32.totalorder %s89, %s103
      %p105 = scmp.eq.s32.totalorder %s16, 0
      %p106 = por %p104, %p105
      %s107 = ssub.s32 %s10, %s17
      %p108 = scmp.eq.s32.totalorder %s107, 0
      %s110 = sadd.s32 %s109, 1
      %s111 = scalar_select %p108, %s109, %s110
      %p114 = pneg %p108
      %p115 = scmp.eq.s32.totalorder %s10, 1
      %p116 = por %p114, %p115
      %p117 = scmp.ne.s32.totalorder %s109, %s112
      %p118 = scmp.eq.s32.totalorder %s10, 0
      %p119 = por %p117, %p118
      %p120 = scmp.ne.s32.totalorder %s109, %s112
      %p121 = scmp.eq.s32.totalorder %s15, 1
      %p122 = por %p120, %p121
      %p123 = scmp.ne.s32.totalorder %s112, %s113
      %p124 = scmp.eq.s32.totalorder %s15, 0
      %p125 = por %p123, %p124
      %p126 = scmp.ne.s32.totalorder %s112, %s113
      %p127 = scmp.eq.s32.totalorder %s16, 1
      %p128 = por %p126, %p127
      %p130 = scmp.ne.s32.totalorder %s113, %s129
      %p131 = scmp.eq.s32.totalorder %s16, 0
      %p132 = por %p130, %p131
      %p133 = scmp.le.s32.totalorder 1, %s10
      %p134 = scmp.lt.s32.totalorder %s10, 3
      %p135 = pnand %p133, %p134
      %p136 = pneg %p135
      // Predicated region
      $region9: #{mlp_block.1} parent=5 // pred_check
        _
      $region10: #{mlp_block.1} parent=5 // pred_check_branch
        %138 = sbr.rel (%p135) target = $region12
      $region11: #{mlp_block.1} parent=5 // pred_region
        %s139 = ssub.s32 %s10, 1
        // Predicated region
        $region13: #{mlp_block.1} parent=11 // pred_check
          %p140 = pneg %p57
        $region14: #{mlp_block.1} parent=11 // pred_check_branch
          %142 = sbr.rel (%p140) target = $region16
        $region15: #{mlp_block.1} parent=11 // pred_region
          _
        $region16: #{mlp_block.1} parent=11 // pred_fallthru
          _
        // Predicated region
        $region17: #{mlp_block.1} parent=11 // pred_check
          %p143 = pneg %p78
        $region18: #{mlp_block.1} parent=11 // pred_check_branch
          %145 = sbr.rel (%p143) target = $region20
        $region19: #{mlp_block.1} parent=11 // pred_region
          _
        $region20: #{mlp_block.1} parent=11 // pred_fallthru
          _
        // Predicated region
        $region21: #{mlp_block.1} parent=11 // pred_check
          %p146 = pneg %p99
        $region22: #{mlp_block.1} parent=11 // pred_check_branch
          %148 = sbr.rel (%p146) target = $region24
        $region23: #{mlp_block.1} parent=11 // pred_region
          _
        $region24: #{mlp_block.1} parent=11 // pred_fallthru
          _
      $region12: #{mlp_block.1} parent=5 // pred_fallthru
        _
      %p149 = scmp.lt.s32.totalorder %s10, 2
      // Predicated region
      $region25: #{mlp_block.1} parent=5 // pred_check
        %p150 = pneg %p149
      $region26: #{mlp_block.1} parent=5 // pred_check_branch
        %152 = sbr.rel (%p150) target = $region28
      $region27: #{mlp_block.1} parent=5 // pred_region
        // Predicated region
        $region29: #{mlp_block.1} parent=27 // pred_check
          %p153 = pneg %p30
        $region30: #{mlp_block.1} parent=27 // pred_check_branch
          %155 = sbr.rel (%p153) target = $region32
        $region31: #{mlp_block.1} parent=27 // pred_region
          %s156 = smul.u32 32, %s10
          %s157 = ssub.s32 38, %s156
          %p158 = scmp.lt.s32.totalorder %s157, 32
          %s159 = scalar_select %p158, %s157, 32
          %s160 = smul.u32 8, %s159
          %p161 = scmp.lt.s32.totalorder %s156, 37
          %s162 = scalar_select %p161, %s156, 37
          %s163 = smul.addr %s162, 8
          %s164 = scalar_lea.vmem %s0, %s163
          %s165 = smul.u32 32, %s10
          %s166 = ssub.s32 38, %s165
          %p167 = scmp.lt.s32.totalorder %s166, 32
          %s168 = scalar_select %p167, %s166, 32
          %s169 = smul.u32 8, %s168
        $region32: #{mlp_block.1} parent=27 // pred_fallthru
          _
      $region28: #{mlp_block.1} parent=5 // pred_fallthru
        _
      %p170 = scmp.le.s32.totalorder 1, %s10
      %p171 = scmp.lt.s32.totalorder %s10, 3
      %p172 = pnand %p170, %p171
      %p173 = pneg %p172
      // Predicated region
      $region33: #{mlp_block.1} parent=5 // pred_check
        _
      $region34: #{mlp_block.1} parent=5 // pred_check_branch
        %175 = sbr.rel (%p172) target = $region36
      $region35: #{mlp_block.1} parent=5 // pred_region
        %s176 = ssub.s32 %s10, 1
        %s177 = smul.u32 32, %s15
        %s178 = ssub.s32 38, %s177
        %p179 = scmp.lt.s32.totalorder %s178, 32
        %s180 = scalar_select %p179, %s178, 32
        %s181 = smul.u32 8, %s180
        %p182 = scmp.lt.s32.totalorder %s177, 37
        %s183 = scalar_select %p182, %s177, 37
        %s184 = smul.addr %s183, 8
        %s185 = scalar_lea.vmem %s0, %s184
        %p186 = pneg %p36
        %p187 = pneg %p33
        %p188 = pneg %p57
        %p189 = pneg %p54
        %p190 = pneg %p78
        %p191 = pneg %p75
        %p192 = pneg %p99
        %p193 = pneg %p96
        %p194 = pneg %p125
        %p195 = pneg %p122
        %s196 = sand.u32 %s112, 1
        %s197 = sand.u32 %s112, 1
        %s198 = smul.addr %s197, 256
        %s199 = scalar_lea.vmem [#allocation2], %s198
        %s200 = smul.u32 32, %s15
        %s201 = ssub.s32 38, %s200
        %p202 = scmp.lt.s32.totalorder %s201, 32
        %s203 = scalar_select %p202, %s201, 32
        %s204 = smul.u32 8, %s203
        %p205 = scmp.lt.s32.totalorder %s200, 37
        %s206 = scalar_select %p205, %s200, 37
        %s207 = smul.addr %s206, 8
        %s208 = scalar_lea.vmem %s0, %s207
        %s209 = smul.u32 32, %s15
        %s210 = ssub.s32 38, %s209
        %p211 = scmp.lt.s32.totalorder %s210, 32
        %s212 = scalar_select %p211, %s210, 32
        %s213 = smul.u32 8, %s212
        %s214 = smul.u32 32, %s15
        %s215 = ssub.s32 38, %s214
        %p216 = scmp.lt.s32.totalorder %s215, 32
        %s217 = scalar_select %p216, %s215, 32
        %s218 = smul.u32 8, %s217
        %v220 = vld [vmem:[%s208] sm:$0xff]
        %v221 = vld [vmem:[%s208 + $0x8] sm:$0xff]
        %v222 = vld [vmem:[%s208 + $0x10] sm:$0xff]
        %v223 = vld [vmem:[%s208 + $0x18] sm:$0xff]
        %v224 = vld [vmem:[%s208 + $0x20] sm:$0xff]
        %v225 = vld [vmem:[%s208 + $0x28] sm:$0xff]
        %v226 = vld [vmem:[%s208 + $0x30] sm:$0xff]
        %v227 = vld [vmem:[%s208 + $0x38] sm:$0xff]
        %v228 = vld [vmem:[%s208 + $0x40] sm:$0xff]
        %v229 = vld [vmem:[%s208 + $0x48] sm:$0xff]
        %v230 = vld [vmem:[%s208 + $0x50] sm:$0xff]
        %v231 = vld [vmem:[%s208 + $0x58] sm:$0xff]
        %v232 = vld [vmem:[%s208 + $0x60] sm:$0xff]
        %v233 = vld [vmem:[%s208 + $0x68] sm:$0xff]
        %v234 = vld [vmem:[%s208 + $0x70] sm:$0xff]
        %v235 = vld [vmem:[%s208 + $0x78] sm:$0xff]
        %v236 = vpack.c.bf16 %v221, %v220
        %v237 = vpack.c.bf16 %v223, %v222
        %v238 = vpack.c.bf16 %v225, %v224
        %v239 = vpack.c.bf16 %v227, %v226
        %v240 = vpack.c.bf16 %v229, %v228
        %v241 = vpack.c.bf16 %v231, %v230
        %v242 = vpack.c.bf16 %v233, %v232
        %v243 = vpack.c.bf16 %v235, %v234
        %v244 = vld [vmem:[%s1] sm:$0xf]
        %v245 = vld [vmem:[%s1 + $0x4] sm:$0xf]
        %v246 = vld [vmem:[%s1 + $0x8] sm:$0xf]
        %v247 = vld [vmem:[%s1 + $0xc] sm:$0xf]
        %v252 = vunpack.c.l.b16 %v244
        %v253 = vunpack.c.l.b16 %v245
        %v254 = vunpack.c.l.b16 %v246
        %v255 = vunpack.c.l.b16 %v247
        %v256 = vpack.c.b16 %v253, %v252
        %v257 = vpack.c.b16 %v255, %v254
        %vm260 = vcmask 261120
        %v262 = vsel %vm260, %v236, 0
        %v265 = vsel %vm260, %v237, 0
        %v268 = vsel %vm260, %v238, 0
        %v271 = vsel %vm260, %v239, 0
        %v274 = vsel %vm260, %v240, 0
        %v277 = vsel %vm260, %v241, 0
        %v280 = vsel %vm260, %v242, 0
        %v283 = vsel %vm260, %v243, 0
        %285 = vmatpush.bf16.msra.mxu0 0
        %286 = vmatpush.bf16.msra.mxu0 0
        %287 = vmatpush.bf16.msra.mxu0 0
        %288 = vmatpush.bf16.msra.mxu0 0
        %289 = vmatpush.bf16.msra.mxu0 0
        %290 = vmatpush.bf16.msra.mxu0 0
        %291 = vmatpush.bf16.msra.mxu0 %v257
        %292 = vmatpush.bf16.msra.mxu0 %v256
        %293 = vmatmul.bf16.gmra.mxu0 %v262
        %v294 = vpop.f32.mrf.mxu0
        %v295 = vadd.f32 0.0, %v294
        %v296 = vpop.f32.mrf.mxu0
        %v297 = vadd.f32 0.0, %v296
        %298 = vmatmul.bf16.gmra.mxu0 %v265
        %v299 = vpop.f32.mrf.mxu0
        %v300 = vadd.f32 0.0, %v299
        %v301 = vpop.f32.mrf.mxu0
        %v302 = vadd.f32 0.0, %v301
        %303 = vmatmul.bf16.gmra.mxu0 %v268
        %v304 = vpop.f32.mrf.mxu0
        %v305 = vadd.f32 0.0, %v304
        %v306 = vpop.f32.mrf.mxu0
        %v307 = vadd.f32 0.0, %v306
        %308 = vmatmul.bf16.gmra.mxu0 %v271
        %v309 = vpop.f32.mrf.mxu0
        %v310 = vadd.f32 0.0, %v309
        %v311 = vpop.f32.mrf.mxu0
        %v312 = vadd.f32 0.0, %v311
        %313 = vmatmul.bf16.gmra.mxu0 %v274
        %v314 = vpop.f32.mrf.mxu0
        %v315 = vadd.f32 0.0, %v314
        %v316 = vpop.f32.mrf.mxu0
        %v317 = vadd.f32 0.0, %v316
        %318 = vmatmul.bf16.gmra.mxu0 %v277
        %v319 = vpop.f32.mrf.mxu0
        %v320 = vadd.f32 0.0, %v319
        %v321 = vpop.f32.mrf.mxu0
        %v322 = vadd.f32 0.0, %v321
        %323 = vmatmul.bf16.gmra.mxu0 %v280
        %v324 = vpop.f32.mrf.mxu0
        %v325 = vadd.f32 0.0, %v324
        %v326 = vpop.f32.mrf.mxu0
        %v327 = vadd.f32 0.0, %v326
        %328 = vmatmul.bf16.gmra.mxu0 %v283
        %v329 = vpop.f32.mrf.mxu0
        %v330 = vadd.f32 0.0, %v329
        %v331 = vpop.f32.mrf.mxu0
        %v332 = vadd.f32 0.0, %v331
        %333 = vdwg.mxu0
        %v334 = vmax.f32 %v295, 0.0
        %v335 = vmax.f32 %v297, 0.0
        %v336 = vmax.f32 %v300, 0.0
        %v337 = vmax.f32 %v302, 0.0
        %v338 = vmax.f32 %v305, 0.0
        %v339 = vmax.f32 %v307, 0.0
        %v340 = vmax.f32 %v310, 0.0
        %v341 = vmax.f32 %v312, 0.0
        %v342 = vmax.f32 %v315, 0.0
        %v343 = vmax.f32 %v317, 0.0
        %v344 = vmax.f32 %v320, 0.0
        %v345 = vmax.f32 %v322, 0.0
        %v346 = vmax.f32 %v325, 0.0
        %v347 = vmax.f32 %v327, 0.0
        %v348 = vmax.f32 %v330, 0.0
        %v349 = vmax.f32 %v332, 0.0
        %v350 = vpack.c.bf16 %v335, %v334
        %v351 = vpack.c.bf16 %v337, %v336
        %v352 = vpack.c.bf16 %v339, %v338
        %v353 = vpack.c.bf16 %v341, %v340
        %v354 = vpack.c.bf16 %v343, %v342
        %v355 = vpack.c.bf16 %v345, %v344
        %v356 = vpack.c.bf16 %v347, %v346
        %v357 = vpack.c.bf16 %v349, %v348
        %v358 = vld [vmem:[%s2] sm:$0xf]
        %v359 = vld [vmem:[%s2 + $0x4] sm:$0xf]
        %v360 = vld [vmem:[%s2 + $0x8] sm:$0xf]
        %v361 = vld [vmem:[%s2 + $0xc] sm:$0xf]
        %v362 = vld [vmem:[%s2 + $0x10] sm:$0xf]
        %v363 = vld [vmem:[%s2 + $0x14] sm:$0xf]
        %v364 = vld [vmem:[%s2 + $0x18] sm:$0xf]
        %v365 = vld [vmem:[%s2 + $0x1c] sm:$0xf]
        %v374 = vunpack.c.l.b16 %v358
        %v375 = vunpack.c.l.b16 %v359
        %v376 = vunpack.c.l.b16 %v360
        %v377 = vunpack.c.l.b16 %v361
        %v378 = vunpack.c.l.b16 %v362
        %v379 = vunpack.c.l.b16 %v363
        %v380 = vunpack.c.l.b16 %v364
        %v381 = vunpack.c.l.b16 %v365
        %v382 = vpack.c.b16 %v375, %v374
        %v383 = vpack.c.b16 %v377, %v376
        %v384 = vpack.c.b16 %v379, %v378
        %v385 = vpack.c.b16 %v381, %v380
        %vm390 = vcmask 523264
        %v392 = vsel %vm390, %v350, 0
        %v395 = vsel %vm390, %v351, 0
        %v398 = vsel %vm390, %v352, 0
        %v401 = vsel %vm390, %v353, 0
        %v404 = vsel %vm390, %v354, 0
        %v407 = vsel %vm390, %v355, 0
        %v410 = vsel %vm390, %v356, 0
        %v413 = vsel %vm390, %v357, 0
        %415 = vmatpush.bf16.msra.mxu0 0
        %416 = vmatpush.bf16.msra.mxu0 0
        %417 = vmatpush.bf16.msra.mxu0 0
        %418 = vmatpush.bf16.msra.mxu0 0
        %419 = vmatpush.bf16.msra.mxu0 %v385
        %420 = vmatpush.bf16.msra.mxu0 %v384
        %421 = vmatpush.bf16.msra.mxu0 %v383
        %422 = vmatpush.bf16.msra.mxu0 %v382
        %423 = vmatmul.bf16.gmra.mxu0 %v392
        %v424 = vpop.f32.mrf.mxu0
        %v425 = vadd.f32 0.0, %v424
        %v426 = vpop.f32.mrf.mxu0
        %v427 = vadd.f32 0.0, %v426
        %428 = vmatmul.bf16.gmra.mxu0 %v395
        %v429 = vpop.f32.mrf.mxu0
        %v430 = vadd.f32 0.0, %v429
        %v431 = vpop.f32.mrf.mxu0
        %v432 = vadd.f32 0.0, %v431
        %433 = vmatmul.bf16.gmra.mxu0 %v398
        %v434 = vpop.f32.mrf.mxu0
        %v435 = vadd.f32 0.0, %v434
        %v436 = vpop.f32.mrf.mxu0
        %v437 = vadd.f32 0.0, %v436
        %438 = vmatmul.bf16.gmra.mxu0 %v401
        %v439 = vpop.f32.mrf.mxu0
        %v440 = vadd.f32 0.0, %v439
        %v441 = vpop.f32.mrf.mxu0
        %v442 = vadd.f32 0.0, %v441
        %443 = vmatmul.bf16.gmra.mxu0 %v404
        %v444 = vpop.f32.mrf.mxu0
        %v445 = vadd.f32 0.0, %v444
        %v446 = vpop.f32.mrf.mxu0
        %v447 = vadd.f32 0.0, %v446
        %448 = vmatmul.bf16.gmra.mxu0 %v407
        %v449 = vpop.f32.mrf.mxu0
        %v450 = vadd.f32 0.0, %v449
        %v451 = vpop.f32.mrf.mxu0
        %v452 = vadd.f32 0.0, %v451
        %453 = vmatmul.bf16.gmra.mxu0 %v410
        %v454 = vpop.f32.mrf.mxu0
        %v455 = vadd.f32 0.0, %v454
        %v456 = vpop.f32.mrf.mxu0
        %v457 = vadd.f32 0.0, %v456
        %458 = vmatmul.bf16.gmra.mxu0 %v413
        %v459 = vpop.f32.mrf.mxu0
        %v460 = vadd.f32 0.0, %v459
        %v461 = vpop.f32.mrf.mxu0
        %v462 = vadd.f32 0.0, %v461
        %463 = vdwg.mxu0
        %v464 = vmax.f32 %v425, 0.0
        %v465 = vmax.f32 %v427, 0.0
        %v466 = vmax.f32 %v430, 0.0
        %v467 = vmax.f32 %v432, 0.0
        %v468 = vmax.f32 %v435, 0.0
        %v469 = vmax.f32 %v437, 0.0
        %v470 = vmax.f32 %v440, 0.0
        %v471 = vmax.f32 %v442, 0.0
        %v472 = vmax.f32 %v445, 0.0
        %v473 = vmax.f32 %v447, 0.0
        %v474 = vmax.f32 %v450, 0.0
        %v475 = vmax.f32 %v452, 0.0
        %v476 = vmax.f32 %v455, 0.0
        %v477 = vmax.f32 %v457, 0.0
        %v478 = vmax.f32 %v460, 0.0
        %v479 = vmax.f32 %v462, 0.0
        %v480 = vpack.c.bf16 %v465, %v464
        %v481 = vpack.c.bf16 %v467, %v466
        %v482 = vpack.c.bf16 %v469, %v468
        %v483 = vpack.c.bf16 %v471, %v470
        %v484 = vpack.c.bf16 %v473, %v472
        %v485 = vpack.c.bf16 %v475, %v474
        %v486 = vpack.c.bf16 %v477, %v476
        %v487 = vpack.c.bf16 %v479, %v478
        %v488 = vld [vmem:[%s3] sm:$0xf]
        %v489 = vld [vmem:[%s3 + $0x4] sm:$0xf]
        %v490 = vld [vmem:[%s3 + $0x8] sm:$0xf]
        %v491 = vld [vmem:[%s3 + $0xc] sm:$0xf]
        %v492 = vld [vmem:[%s3 + $0x10] sm:$0xf]
        %v493 = vld [vmem:[%s3 + $0x14] sm:$0xf]
        %v494 = vld [vmem:[%s3 + $0x18] sm:$0xf]
        %v495 = vld [vmem:[%s3 + $0x1c] sm:$0xf]
        %v504 = vunpack.c.l.b16 %v488
        %v505 = vunpack.c.l.b16 %v489
        %v506 = vunpack.c.l.b16 %v490
        %v507 = vunpack.c.l.b16 %v491
        %v508 = vunpack.c.l.b16 %v492
        %v509 = vunpack.c.l.b16 %v493
        %v510 = vunpack.c.l.b16 %v494
        %v511 = vunpack.c.l.b16 %v495
        %v512 = vpack.c.b16 %v505, %v504
        %v513 = vpack.c.b16 %v507, %v506
        %v514 = vpack.c.b16 %v509, %v508
        %v515 = vpack.c.b16 %v511, %v510
        %v521 = vsel %vm390, %v480, 0
        %v524 = vsel %vm390, %v481, 0
        %v527 = vsel %vm390, %v482, 0
        %v530 = vsel %vm390, %v483, 0
        %v533 = vsel %vm390, %v484, 0
        %v536 = vsel %vm390, %v485, 0
        %v539 = vsel %vm390, %v486, 0
        %v542 = vsel %vm390, %v487, 0
        %544 = vmatpush.bf16.msra.mxu0 0
        %545 = vmatpush.bf16.msra.mxu0 0
        %546 = vmatpush.bf16.msra.mxu0 0
        %547 = vmatpush.bf16.msra.mxu0 0
        %548 = vmatpush.bf16.msra.mxu0 %v515
        %549 = vmatpush.bf16.msra.mxu0 %v514
        %550 = vmatpush.bf16.msra.mxu0 %v513
        %551 = vmatpush.bf16.msra.mxu0 %v512
        %552 = vmatmul.bf16.gmra.mxu0 %v521
        %v553 = vpop.f32.mrf.mxu0
        %v554 = vadd.f32 0.0, %v553
        %v555 = vpop.f32.mrf.mxu0
        %v556 = vadd.f32 0.0, %v555
        %557 = vmatmul.bf16.gmra.mxu0 %v524
        %v558 = vpop.f32.mrf.mxu0
        %v559 = vadd.f32 0.0, %v558
        %v560 = vpop.f32.mrf.mxu0
        %v561 = vadd.f32 0.0, %v560
        %562 = vmatmul.bf16.gmra.mxu0 %v527
        %v563 = vpop.f32.mrf.mxu0
        %v564 = vadd.f32 0.0, %v563
        %v565 = vpop.f32.mrf.mxu0
        %v566 = vadd.f32 0.0, %v565
        %567 = vmatmul.bf16.gmra.mxu0 %v530
        %v568 = vpop.f32.mrf.mxu0
        %v569 = vadd.f32 0.0, %v568
        %v570 = vpop.f32.mrf.mxu0
        %v571 = vadd.f32 0.0, %v570
        %572 = vmatmul.bf16.gmra.mxu0 %v533
        %v573 = vpop.f32.mrf.mxu0
        %v574 = vadd.f32 0.0, %v573
        %v575 = vpop.f32.mrf.mxu0
        %v576 = vadd.f32 0.0, %v575
        %577 = vmatmul.bf16.gmra.mxu0 %v536
        %v578 = vpop.f32.mrf.mxu0
        %v579 = vadd.f32 0.0, %v578
        %v580 = vpop.f32.mrf.mxu0
        %v581 = vadd.f32 0.0, %v580
        %582 = vmatmul.bf16.gmra.mxu0 %v539
        %v583 = vpop.f32.mrf.mxu0
        %v584 = vadd.f32 0.0, %v583
        %v585 = vpop.f32.mrf.mxu0
        %v586 = vadd.f32 0.0, %v585
        %587 = vmatmul.bf16.gmra.mxu0 %v542
        %v588 = vpop.f32.mrf.mxu0
        %v589 = vadd.f32 0.0, %v588
        %v590 = vpop.f32.mrf.mxu0
        %v591 = vadd.f32 0.0, %v590
        %592 = vdwg.mxu0
        %vm593 = vcmask 130048
        %594 = vst.msk [vmem:[%s199] sm:$0xff] %vm593, %v554
        %595 = vst.msk [vmem:[%s199 + $0x8] sm:$0xff] %vm593, %v556
        %596 = vst.msk [vmem:[%s199 + $0x10] sm:$0xff] %vm593, %v559
        %597 = vst.msk [vmem:[%s199 + $0x18] sm:$0xff] %vm593, %v561
        %598 = vst.msk [vmem:[%s199 + $0x20] sm:$0xff] %vm593, %v564
        %599 = vst.msk [vmem:[%s199 + $0x28] sm:$0xff] %vm593, %v566
        %600 = vst.msk [vmem:[%s199 + $0x30] sm:$0xff] %vm593, %v569
        %601 = vst.msk [vmem:[%s199 + $0x38] sm:$0xff] %vm593, %v571
        %602 = vst.msk [vmem:[%s199 + $0x40] sm:$0xff] %vm593, %v574
        %603 = vst.msk [vmem:[%s199 + $0x48] sm:$0xff] %vm593, %v576
        %604 = vst.msk [vmem:[%s199 + $0x50] sm:$0xff] %vm593, %v579
        %605 = vst.msk [vmem:[%s199 + $0x58] sm:$0xff] %vm593, %v581
        %606 = vst.msk [vmem:[%s199 + $0x60] sm:$0xff] %vm593, %v584
        %607 = vst.msk [vmem:[%s199 + $0x68] sm:$0xff] %vm593, %v586
        %608 = vst.msk [vmem:[%s199 + $0x70] sm:$0xff] %vm593, %v589
        %609 = vst.msk [vmem:[%s199 + $0x78] sm:$0xff] %vm593, %v591
        %s610 = scalar_lea.vmem %s208, 128
        %v611 = vld [vmem:[%s610] sm:$0xff]
        %v612 = vld [vmem:[%s610 + $0x8] sm:$0xff]
        %v613 = vld [vmem:[%s610 + $0x10] sm:$0xff]
        %v614 = vld [vmem:[%s610 + $0x18] sm:$0xff]
        %v615 = vld [vmem:[%s610 + $0x20] sm:$0xff]
        %v616 = vld [vmem:[%s610 + $0x28] sm:$0xff]
        %v617 = vld [vmem:[%s610 + $0x30] sm:$0xff]
        %v618 = vld [vmem:[%s610 + $0x38] sm:$0xff]
        %v619 = vld [vmem:[%s610 + $0x40] sm:$0xff]
        %v620 = vld [vmem:[%s610 + $0x48] sm:$0xff]
        %v621 = vld [vmem:[%s610 + $0x50] sm:$0xff]
        %v622 = vld [vmem:[%s610 + $0x58] sm:$0xff]
        %v623 = vld [vmem:[%s610 + $0x60] sm:$0xff]
        %v624 = vld [vmem:[%s610 + $0x68] sm:$0xff]
        %v625 = vld [vmem:[%s610 + $0x70] sm:$0xff]
        %v626 = vld [vmem:[%s610 + $0x78] sm:$0xff]
        %v627 = vpack.c.bf16 %v612, %v611
        %v628 = vpack.c.bf16 %v614, %v613
        %v629 = vpack.c.bf16 %v616, %v615
        %v630 = vpack.c.bf16 %v618, %v617
        %v631 = vpack.c.bf16 %v620, %v619
        %v632 = vpack.c.bf16 %v622, %v621
        %v633 = vpack.c.bf16 %v624, %v623
        %v634 = vpack.c.bf16 %v626, %v625
        %v635 = vld [vmem:[%s1] sm:$0xf]
        %v636 = vld [vmem:[%s1 + $0x4] sm:$0xf]
        %v637 = vld [vmem:[%s1 + $0x8] sm:$0xf]
        %v638 = vld [vmem:[%s1 + $0xc] sm:$0xf]
        %v643 = vunpack.c.l.b16 %v635
        %v644 = vunpack.c.l.b16 %v636
        %v645 = vunpack.c.l.b16 %v637
        %v646 = vunpack.c.l.b16 %v638
        %v647 = vpack.c.b16 %v644, %v643
        %v648 = vpack.c.b16 %v646, %v645
        %v652 = vsel %vm260, %v627, 0
        %v655 = vsel %vm260, %v628, 0
        %v658 = vsel %vm260, %v629, 0
        %v661 = vsel %vm260, %v630, 0
        %v664 = vsel %vm260, %v631, 0
        %v667 = vsel %vm260, %v632, 0
        %v670 = vsel %vm260, %v633, 0
        %v673 = vsel %vm260, %v634, 0
        %675 = vmatpush.bf16.msra.mxu0 0
        %676 = vmatpush.bf16.msra.mxu0 0
        %677 = vmatpush.bf16.msra.mxu0 0
        %678 = vmatpush.bf16.msra.mxu0 0
        %679 = vmatpush.bf16.msra.mxu0 0
        %680 = vmatpush.bf16.msra.mxu0 0
        %681 = vmatpush.bf16.msra.mxu0 %v648
        %682 = vmatpush.bf16.msra.mxu0 %v647
        %683 = vmatmul.bf16.gmra.mxu0 %v652
        %v684 = vpop.f32.mrf.mxu0
        %v685 = vadd.f32 0.0, %v684
        %v686 = vpop.f32.mrf.mxu0
        %v687 = vadd.f32 0.0, %v686
        %688 = vmatmul.bf16.gmra.mxu0 %v655
        %v689 = vpop.f32.mrf.mxu0
        %v690 = vadd.f32 0.0, %v689
        %v691 = vpop.f32.mrf.mxu0
        %v692 = vadd.f32 0.0, %v691
        %693 = vmatmul.bf16.gmra.mxu0 %v658
        %v694 = vpop.f32.mrf.mxu0
        %v695 = vadd.f32 0.0, %v694
        %v696 = vpop.f32.mrf.mxu0
        %v697 = vadd.f32 0.0, %v696
        %698 = vmatmul.bf16.gmra.mxu0 %v661
        %v699 = vpop.f32.mrf.mxu0
        %v700 = vadd.f32 0.0, %v699
        %v701 = vpop.f32.mrf.mxu0
        %v702 = vadd.f32 0.0, %v701
        %703 = vmatmul.bf16.gmra.mxu0 %v664
        %v704 = vpop.f32.mrf.mxu0
        %v705 = vadd.f32 0.0, %v704
        %v706 = vpop.f32.mrf.mxu0
        %v707 = vadd.f32 0.0, %v706
        %708 = vmatmul.bf16.gmra.mxu0 %v667
        %v709 = vpop.f32.mrf.mxu0
        %v710 = vadd.f32 0.0, %v709
        %v711 = vpop.f32.mrf.mxu0
        %v712 = vadd.f32 0.0, %v711
        %713 = vmatmul.bf16.gmra.mxu0 %v670
        %v714 = vpop.f32.mrf.mxu0
        %v715 = vadd.f32 0.0, %v714
        %v716 = vpop.f32.mrf.mxu0
        %v717 = vadd.f32 0.0, %v716
        %718 = vmatmul.bf16.gmra.mxu0 %v673
        %v719 = vpop.f32.mrf.mxu0
        %v720 = vadd.f32 0.0, %v719
        %v721 = vpop.f32.mrf.mxu0
        %v722 = vadd.f32 0.0, %v721
        %723 = vdwg.mxu0
        %v724 = vmax.f32 %v685, 0.0
        %v725 = vmax.f32 %v687, 0.0
        %v726 = vmax.f32 %v690, 0.0
        %v727 = vmax.f32 %v692, 0.0
        %v728 = vmax.f32 %v695, 0.0
        %v729 = vmax.f32 %v697, 0.0
        %v730 = vmax.f32 %v700, 0.0
        %v731 = vmax.f32 %v702, 0.0
        %v732 = vmax.f32 %v705, 0.0
        %v733 = vmax.f32 %v707, 0.0
        %v734 = vmax.f32 %v710, 0.0
        %v735 = vmax.f32 %v712, 0.0
        %v736 = vmax.f32 %v715, 0.0
        %v737 = vmax.f32 %v717, 0.0
        %v738 = vmax.f32 %v720, 0.0
        %v739 = vmax.f32 %v722, 0.0
        %v740 = vpack.c.bf16 %v725, %v724
        %v741 = vpack.c.bf16 %v727, %v726
        %v742 = vpack.c.bf16 %v729, %v728
        %v743 = vpack.c.bf16 %v731, %v730
        %v744 = vpack.c.bf16 %v733, %v732
        %v745 = vpack.c.bf16 %v735, %v734
        %v746 = vpack.c.bf16 %v737, %v736
        %v747 = vpack.c.bf16 %v739, %v738
        %v748 = vld [vmem:[%s2] sm:$0xf]
        %v749 = vld [vmem:[%s2 + $0x4] sm:$0xf]
        %v750 = vld [vmem:[%s2 + $0x8] sm:$0xf]
        %v751 = vld [vmem:[%s2 + $0xc] sm:$0xf]
        %v752 = vld [vmem:[%s2 + $0x10] sm:$0xf]
        %v753 = vld [vmem:[%s2 + $0x14] sm:$0xf]
        %v754 = vld [vmem:[%s2 + $0x18] sm:$0xf]
        %v755 = vld [vmem:[%s2 + $0x1c] sm:$0xf]
        %v764 = vunpack.c.l.b16 %v748
        %v765 = vunpack.c.l.b16 %v749
        %v766 = vunpack.c.l.b16 %v750
        %v767 = vunpack.c.l.b16 %v751
        %v768 = vunpack.c.l.b16 %v752
        %v769 = vunpack.c.l.b16 %v753
        %v770 = vunpack.c.l.b16 %v754
        %v771 = vunpack.c.l.b16 %v755
        %v772 = vpack.c.b16 %v765, %v764
        %v773 = vpack.c.b16 %v767, %v766
        %v774 = vpack.c.b16 %v769, %v768
        %v775 = vpack.c.b16 %v771, %v770
        %v781 = vsel %vm390, %v740, 0
        %v784 = vsel %vm390, %v741, 0
        %v787 = vsel %vm390, %v742, 0
        %v790 = vsel %vm390, %v743, 0
        %v793 = vsel %vm390, %v744, 0
        %v796 = vsel %vm390, %v745, 0
        %v799 = vsel %vm390, %v746, 0
        %v802 = vsel %vm390, %v747, 0
        %804 = vmatpush.bf16.msra.mxu0 0
        %805 = vmatpush.bf16.msra.mxu0 0
        %806 = vmatpush.bf16.msra.mxu0 0
        %807 = vmatpush.bf16.msra.mxu0 0
        %808 = vmatpush.bf16.msra.mxu0 %v775
        %809 = vmatpush.bf16.msra.mxu0 %v774
        %810 = vmatpush.bf16.msra.mxu0 %v773
        %811 = vmatpush.bf16.msra.mxu0 %v772
        %812 = vmatmul.bf16.gmra.mxu0 %v781
        %v813 = vpop.f32.mrf.mxu0
        %v814 = vadd.f32 0.0, %v813
        %v815 = vpop.f32.mrf.mxu0
        %v816 = vadd.f32 0.0, %v815
        %817 = vmatmul.bf16.gmra.mxu0 %v784
        %v818 = vpop.f32.mrf.mxu0
        %v819 = vadd.f32 0.0, %v818
        %v820 = vpop.f32.mrf.mxu0
        %v821 = vadd.f32 0.0, %v820
        %822 = vmatmul.bf16.gmra.mxu0 %v787
        %v823 = vpop.f32.mrf.mxu0
        %v824 = vadd.f32 0.0, %v823
        %v825 = vpop.f32.mrf.mxu0
        %v826 = vadd.f32 0.0, %v825
        %827 = vmatmul.bf16.gmra.mxu0 %v790
        %v828 = vpop.f32.mrf.mxu0
        %v829 = vadd.f32 0.0, %v828
        %v830 = vpop.f32.mrf.mxu0
        %v831 = vadd.f32 0.0, %v830
        %832 = vmatmul.bf16.gmra.mxu0 %v793
        %v833 = vpop.f32.mrf.mxu0
        %v834 = vadd.f32 0.0, %v833
        %v835 = vpop.f32.mrf.mxu0
        %v836 = vadd.f32 0.0, %v835
        %837 = vmatmul.bf16.gmra.mxu0 %v796
        %v838 = vpop.f32.mrf.mxu0
        %v839 = vadd.f32 0.0, %v838
        %v840 = vpop.f32.mrf.mxu0
        %v841 = vadd.f32 0.0, %v840
        %842 = vmatmul.bf16.gmra.mxu0 %v799
        %v843 = vpop.f32.mrf.mxu0
        %v844 = vadd.f32 0.0, %v843
        %v845 = vpop.f32.mrf.mxu0
        %v846 = vadd.f32 0.0, %v845
        %847 = vmatmul.bf16.gmra.mxu0 %v802
        %v848 = vpop.f32.mrf.mxu0
        %v849 = vadd.f32 0.0, %v848
        %v850 = vpop.f32.mrf.mxu0
        %v851 = vadd.f32 0.0, %v850
        %852 = vdwg.mxu0
        %v853 = vmax.f32 %v814, 0.0
        %v854 = vmax.f32 %v816, 0.0
        %v855 = vmax.f32 %v819, 0.0
        %v856 = vmax.f32 %v821, 0.0
        %v857 = vmax.f32 %v824, 0.0
        %v858 = vmax.f32 %v826, 0.0
        %v859 = vmax.f32 %v829, 0.0
        %v860 = vmax.f32 %v831, 0.0
        %v861 = vmax.f32 %v834, 0.0
        %v862 = vmax.f32 %v836, 0.0
        %v863 = vmax.f32 %v839, 0.0
        %v864 = vmax.f32 %v841, 0.0
        %v865 = vmax.f32 %v844, 0.0
        %v866 = vmax.f32 %v846, 0.0
        %v867 = vmax.f32 %v849, 0.0
        %v868 = vmax.f32 %v851, 0.0
        %v869 = vpack.c.bf16 %v854, %v853
        %v870 = vpack.c.bf16 %v856, %v855
        %v871 = vpack.c.bf16 %v858, %v857
        %v872 = vpack.c.bf16 %v860, %v859
        %v873 = vpack.c.bf16 %v862, %v861
        %v874 = vpack.c.bf16 %v864, %v863
        %v875 = vpack.c.bf16 %v866, %v865
        %v876 = vpack.c.bf16 %v868, %v867
        %v877 = vld [vmem:[%s3] sm:$0xf]
        %v878 = vld [vmem:[%s3 + $0x4] sm:$0xf]
        %v879 = vld [vmem:[%s3 + $0x8] sm:$0xf]
        %v880 = vld [vmem:[%s3 + $0xc] sm:$0xf]
        %v881 = vld [vmem:[%s3 + $0x10] sm:$0xf]
        %v882 = vld [vmem:[%s3 + $0x14] sm:$0xf]
        %v883 = vld [vmem:[%s3 + $0x18] sm:$0xf]
        %v884 = vld [vmem:[%s3 + $0x1c] sm:$0xf]
        %v893 = vunpack.c.l.b16 %v877
        %v894 = vunpack.c.l.b16 %v878
        %v895 = vunpack.c.l.b16 %v879
        %v896 = vunpack.c.l.b16 %v880
        %v897 = vunpack.c.l.b16 %v881
        %v898 = vunpack.c.l.b16 %v882
        %v899 = vunpack.c.l.b16 %v883
        %v900 = vunpack.c.l.b16 %v884
        %v901 = vpack.c.b16 %v894, %v893
        %v902 = vpack.c.b16 %v896, %v895
        %v903 = vpack.c.b16 %v898, %v897
        %v904 = vpack.c.b16 %v900, %v899
        %v910 = vsel %vm390, %v869, 0
        %v913 = vsel %vm390, %v870, 0
        %v916 = vsel %vm390, %v871, 0
        %v919 = vsel %vm390, %v872, 0
        %v922 = vsel %vm390, %v873, 0
        %v925 = vsel %vm390, %v874, 0
        %v928 = vsel %vm390, %v875, 0
        %v931 = vsel %vm390, %v876, 0
        %933 = vmatpush.bf16.msra.mxu0 0
        %934 = vmatpush.bf16.msra.mxu0 0
        %935 = vmatpush.bf16.msra.mxu0 0
        %936 = vmatpush.bf16.msra.mxu0 0
        %937 = vmatpush.bf16.msra.mxu0 %v904
        %938 = vmatpush.bf16.msra.mxu0 %v903
        %939 = vmatpush.bf16.msra.mxu0 %v902
        %940 = vmatpush.bf16.msra.mxu0 %v901
        %941 = vmatmul.bf16.gmra.mxu0 %v910
        %v942 = vpop.f32.mrf.mxu0
        %v943 = vadd.f32 0.0, %v942
        %v944 = vpop.f32.mrf.mxu0
        %v945 = vadd.f32 0.0, %v944
        %946 = vmatmul.bf16.gmra.mxu0 %v913
        %v947 = vpop.f32.mrf.mxu0
        %v948 = vadd.f32 0.0, %v947
        %v949 = vpop.f32.mrf.mxu0
        %v950 = vadd.f32 0.0, %v949
        %951 = vmatmul.bf16.gmra.mxu0 %v916
        %v952 = vpop.f32.mrf.mxu0
        %v953 = vadd.f32 0.0, %v952
        %v954 = vpop.f32.mrf.mxu0
        %v955 = vadd.f32 0.0, %v954
        %956 = vmatmul.bf16.gmra.mxu0 %v919
        %v957 = vpop.f32.mrf.mxu0
        %v958 = vadd.f32 0.0, %v957
        %v959 = vpop.f32.mrf.mxu0
        %v960 = vadd.f32 0.0, %v959
        %961 = vmatmul.bf16.gmra.mxu0 %v922
        %v962 = vpop.f32.mrf.mxu0
        %v963 = vadd.f32 0.0, %v962
        %v964 = vpop.f32.mrf.mxu0
        %v965 = vadd.f32 0.0, %v964
        %966 = vmatmul.bf16.gmra.mxu0 %v925
        %v967 = vpop.f32.mrf.mxu0
        %v968 = vadd.f32 0.0, %v967
        %v969 = vpop.f32.mrf.mxu0
        %v970 = vadd.f32 0.0, %v969
        %971 = vmatmul.bf16.gmra.mxu0 %v928
        %v972 = vpop.f32.mrf.mxu0
        %v973 = vadd.f32 0.0, %v972
        %v974 = vpop.f32.mrf.mxu0
        %v975 = vadd.f32 0.0, %v974
        %976 = vmatmul.bf16.gmra.mxu0 %v931
        %v977 = vpop.f32.mrf.mxu0
        %v978 = vadd.f32 0.0, %v977
        %v979 = vpop.f32.mrf.mxu0
        %v980 = vadd.f32 0.0, %v979
        %981 = vdwg.mxu0
        %s982 = scalar_lea.vmem %s199, 128 [#allocation2]
        %983 = vst.msk [vmem:[%s982] sm:$0xff] %vm593, %v943
        %984 = vst.msk [vmem:[%s982 + $0x8] sm:$0xff] %vm593, %v945
        %985 = vst.msk [vmem:[%s982 + $0x10] sm:$0xff] %vm593, %v948
        %986 = vst.msk [vmem:[%s982 + $0x18] sm:$0xff] %vm593, %v950
        %987 = vst.msk [vmem:[%s982 + $0x20] sm:$0xff] %vm593, %v953
        %988 = vst.msk [vmem:[%s982 + $0x28] sm:$0xff] %vm593, %v955
        %989 = vst.msk [vmem:[%s982 + $0x30] sm:$0xff] %vm593, %v958
        %990 = vst.msk [vmem:[%s982 + $0x38] sm:$0xff] %vm593, %v960
        %991 = vst.msk [vmem:[%s982 + $0x40] sm:$0xff] %vm593, %v963
        %992 = vst.msk [vmem:[%s982 + $0x48] sm:$0xff] %vm593, %v965
        %993 = vst.msk [vmem:[%s982 + $0x50] sm:$0xff] %vm593, %v968
        %994 = vst.msk [vmem:[%s982 + $0x58] sm:$0xff] %vm593, %v970
        %995 = vst.msk [vmem:[%s982 + $0x60] sm:$0xff] %vm593, %v973
        %996 = vst.msk [vmem:[%s982 + $0x68] sm:$0xff] %vm593, %v975
        %997 = vst.msk [vmem:[%s982 + $0x70] sm:$0xff] %vm593, %v978
        %998 = vst.msk [vmem:[%s982 + $0x78] sm:$0xff] %vm593, %v980
        %s999 = sand.u32 %s112, 1
        %s1000 = sand.u32 %s112, 1
        %s1001 = smul.addr %s1000, 256
        %s1002 = scalar_lea.vmem [#allocation2], %s1001
        // Predicated region
        $region37: #{mlp_block.1} parent=35 // pred_check
          %p1003 = pneg %p122
        $region38: #{mlp_block.1} parent=35 // pred_check_branch
          %1005 = sbr.rel (%p1003) target = $region40
        $region39: #{mlp_block.1} parent=35 // pred_region
          %s1006 = smul.u32 32, %s15
          %s1007 = ssub.s32 38, %s1006
          %p1008 = scmp.lt.s32.totalorder %s1007, 32
          %s1009 = scalar_select %p1008, %s1007, 32
          %s1010 = smul.u32 8, %s1009
          %p1011 = scmp.ne.s32.totalorder 0, %s1010
          %s1012 = smul.addr %s1006, 8
          %s1013 = scalar_lea.vmem %s4, %s1012
          // Predicated region
          $region41: #{mlp_block.1} parent=39 // pred_check
            %p1014 = pneg %p1011
          $region42: #{mlp_block.1} parent=39 // pred_check_branch
            %1016 = sbr.rel (%p1014) target = $region44
          $region43: #{mlp_block.1} parent=39 // pred_region
            // Predicated region
            $region45: #{mlp_block.1} parent=43 // pred_check
              _
            $region46: #{mlp_block.1} parent=43 // pred_check_branch
              %1018 = sbr.rel (0) target = $region48
            $region47: #{mlp_block.1} parent=43 // pred_region
              // Predicated region
              $region67: #{mlp_block.1} parent=47 // pred_check
                _
              $region68: #{mlp_block.1} parent=47 // pred_check_branch
                %1130 = sbr.rel (0) target = $region70
              $region69: #{mlp_block.1} parent=47 // pred_region
                %s1131 = sshrl.u32 %s1009, 5
                // While loop
                $region71: #{mlp_block.1} parent=69 // loop_pre_header
                  _
                $region72: #{mlp_block.1} parent=69 // loop_header
                  %s1133 = sphi 0, %s1135
                  %p1134 = scmp.ge.s32.totalorder %s1133, %s1131
                  %s1138 = sphi 0, %s1207
                  %s1139 = sphi %s1002, %s1210
                  %s1140 = sphi %s1013, %s1211
                $region73: #{mlp_block.1} parent=69 // loop_header_branch
                  %1137 = sbr.rel (%p1134) target = $region77
                $region74: #{mlp_block.1} parent=69 // loop_body
                  %v1141 = vld [vmem:[%s1139] sm:$0xff]
                  %1142 = vst [vmem:[%s1140] sm:$0xff] %v1141
                  %v1143 = vld [vmem:[%s1139 + $0x8] sm:$0xff]
                  %1144 = vst [vmem:[%s1140 + $0x8] sm:$0xff] %v1143
                  %v1145 = vld [vmem:[%s1139 + $0x10] sm:$0xff]
                  %1146 = vst [vmem:[%s1140 + $0x10] sm:$0xff] %v1145
                  %v1147 = vld [vmem:[%s1139 + $0x18] sm:$0xff]
                  %1148 = vst [vmem:[%s1140 + $0x18] sm:$0xff] %v1147
                  %v1149 = vld [vmem:[%s1139 + $0x20] sm:$0xff]
                  %1150 = vst [vmem:[%s1140 + $0x20] sm:$0xff] %v1149
                  %v1151 = vld [vmem:[%s1139 + $0x28] sm:$0xff]
                  %1152 = vst [vmem:[%s1140 + $0x28] sm:$0xff] %v1151
                  %v1153 = vld [vmem:[%s1139 + $0x30] sm:$0xff]
                  %1154 = vst [vmem:[%s1140 + $0x30] sm:$0xff] %v1153
                  %v1155 = vld [vmem:[%s1139 + $0x38] sm:$0xff]
                  %1156 = vst [vmem:[%s1140 + $0x38] sm:$0xff] %v1155
                  %v1157 = vld [vmem:[%s1139 + $0x40] sm:$0xff]
                  %1158 = vst [vmem:[%s1140 + $0x40] sm:$0xff] %v1157
                  %v1159 = vld [vmem:[%s1139 + $0x48] sm:$0xff]
                  %1160 = vst [vmem:[%s1140 + $0x48] sm:$0xff] %v1159
                  %v1161 = vld [vmem:[%s1139 + $0x50] sm:$0xff]
                  %1162 = vst [vmem:[%s1140 + $0x50] sm:$0xff] %v1161
                  %v1163 = vld [vmem:[%s1139 + $0x58] sm:$0xff]
                  %1164 = vst [vmem:[%s1140 + $0x58] sm:$0xff] %v1163
                  %v1165 = vld [vmem:[%s1139 + $0x60] sm:$0xff]
                  %1166 = vst [vmem:[%s1140 + $0x60] sm:$0xff] %v1165
                  %v1167 = vld [vmem:[%s1139 + $0x68] sm:$0xff]
                  %1168 = vst [vmem:[%s1140 + $0x68] sm:$0xff] %v1167
                  %v1169 = vld [vmem:[%s1139 + $0x70] sm:$0xff]
                  %1170 = vst [vmem:[%s1140 + $0x70] sm:$0xff] %v1169
                  %v1171 = vld [vmem:[%s1139 + $0x78] sm:$0xff]
                  %1172 = vst [vmem:[%s1140 + $0x78] sm:$0xff] %v1171
                  %v1173 = vld [vmem:[%s1139 + $0x80] sm:$0xff]
                  %1174 = vst [vmem:[%s1140 + $0x80] sm:$0xff] %v1173
                  %v1175 = vld [vmem:[%s1139 + $0x88] sm:$0xff]
                  %1176 = vst [vmem:[%s1140 + $0x88] sm:$0xff] %v1175
                  %v1177 = vld [vmem:[%s1139 + $0x90] sm:$0xff]
                  %1178 = vst [vmem:[%s1140 + $0x90] sm:$0xff] %v1177
                  %v1179 = vld [vmem:[%s1139 + $0x98] sm:$0xff]
                  %1180 = vst [vmem:[%s1140 + $0x98] sm:$0xff] %v1179
                  %v1181 = vld [vmem:[%s1139 + $0xa0] sm:$0xff]
                  %1182 = vst [vmem:[%s1140 + $0xa0] sm:$0xff] %v1181
                  %v1183 = vld [vmem:[%s1139 + $0xa8] sm:$0xff]
                  %1184 = vst [vmem:[%s1140 + $0xa8] sm:$0xff] %v1183
                  %v1185 = vld [vmem:[%s1139 + $0xb0] sm:$0xff]
                  %1186 = vst [vmem:[%s1140 + $0xb0] sm:$0xff] %v1185
                  %v1187 = vld [vmem:[%s1139 + $0xb8] sm:$0xff]
                  %1188 = vst [vmem:[%s1140 + $0xb8] sm:$0xff] %v1187
                  %v1189 = vld [vmem:[%s1139 + $0xc0] sm:$0xff]
                  %1190 = vst [vmem:[%s1140 + $0xc0] sm:$0xff] %v1189
                  %v1191 = vld [vmem:[%s1139 + $0xc8] sm:$0xff]
                  %1192 = vst [vmem:[%s1140 + $0xc8] sm:$0xff] %v1191
                  %v1193 = vld [vmem:[%s1139 + $0xd0] sm:$0xff]
                  %1194 = vst [vmem:[%s1140 + $0xd0] sm:$0xff] %v1193
                  %v1195 = vld [vmem:[%s1139 + $0xd8] sm:$0xff]
                  %1196 = vst [vmem:[%s1140 + $0xd8] sm:$0xff] %v1195
                  %v1197 = vld [vmem:[%s1139 + $0xe0] sm:$0xff]
                  %1198 = vst [vmem:[%s1140 + $0xe0] sm:$0xff] %v1197
                  %v1199 = vld [vmem:[%s1139 + $0xe8] sm:$0xff]
                  %1200 = vst [vmem:[%s1140 + $0xe8] sm:$0xff] %v1199
                  %v1201 = vld [vmem:[%s1139 + $0xf0] sm:$0xff]
                  %1202 = vst [vmem:[%s1140 + $0xf0] sm:$0xff] %v1201
                  %v1203 = vld [vmem:[%s1139 + $0xf8] sm:$0xff]
                  %1204 = vst [vmem:[%s1140 + $0xf8] sm:$0xff] %v1203
                  %s1205 = sadd.s32 1, %s1138
                  %p1206 = scmp.ge.s32.totalorder %s1205, %s1131
                  %s1207 = scalar_select %p1206, 0, %s1205
                  %s1208 = smul.u32 %s1207, 256
                  %s1209 = smul.u32 %s1207, 256
                  %s1210 = scalar_lea.vmem %s1002, %s1208 [#allocation2]
                  %s1211 = scalar_lea.vmem %s1013, %s1209
                $region75: #{mlp_block.1} parent=69 // loop_footer
                  %s1135 = sadd.s32 %s1133, 1
                $region76: #{mlp_block.1} parent=69 // loop_footer_branch
                  %1132 = sbr.rel target = $region72
                $region77: #{mlp_block.1} parent=69 // loop_exit
                  _
                %s1212 = sshrl.u32 %s1009, 5
                %s1213 = sand.u32 %s1009, 31
                %s1214 = smul.u32 %s1212, 32
                %s1215 = smul.u32 8, %s1214
                %s1216 = scalar_lea.vmem %s1002, %s1215 [#allocation2]
                %s1217 = smul.u32 8, %s1214
                %s1218 = scalar_lea.vmem %s1013, %s1217
                // While loop
                $region78: #{mlp_block.1} parent=69 // loop_pre_header
                  _
                $region79: #{mlp_block.1} parent=69 // loop_header
                  %s1220 = sphi 0, %s1222
                  %p1221 = scmp.ge.s32.totalorder %s1220, %s1213
                  %s1225 = sphi 0, %s1232
                  %s1226 = sphi %s1216, %s1235
                  %s1227 = sphi %s1218, %s1236
                $region80: #{mlp_block.1} parent=69 // loop_header_branch
                  %1224 = sbr.rel (%p1221) target = $region84
                $region81: #{mlp_block.1} parent=69 // loop_body
                  %v1228 = vld [vmem:[%s1226] sm:$0xff]
                  %1229 = vst [vmem:[%s1227] sm:$0xff] %v1228
                  %s1230 = sadd.s32 1, %s1225
                  %p1231 = scmp.ge.s32.totalorder %s1230, %s1213
                  %s1232 = scalar_select %p1231, 0, %s1230
                  %s1233 = smul.u32 %s1232, 8
                  %s1234 = smul.u32 %s1232, 8
                  %s1235 = scalar_lea.vmem %s1216, %s1233 [#allocation2]
                  %s1236 = scalar_lea.vmem %s1218, %s1234
                $region82: #{mlp_block.1} parent=69 // loop_footer
                  %s1222 = sadd.s32 %s1220, 1
                $region83: #{mlp_block.1} parent=69 // loop_footer_branch
                  %1219 = sbr.rel target = $region79
                $region84: #{mlp_block.1} parent=69 // loop_exit
                  _
              $region70: #{mlp_block.1} parent=47 // pred_fallthru
                _
              // Predicated region
              $region85: #{mlp_block.1} parent=47 // pred_check
                _
              $region86: #{mlp_block.1} parent=47 // pred_check_branch
                %1238 = sbr.rel target = $region88
              $region87: #{mlp_block.1} parent=47 // pred_region
                _
              $region88: #{mlp_block.1} parent=47 // pred_fallthru
                _
            $region48: #{mlp_block.1} parent=43 // pred_fallthru
              _
            // Predicated region
            $region49: #{mlp_block.1} parent=43 // pred_check
              _
            $region50: #{mlp_block.1} parent=43 // pred_check_branch
              %1020 = sbr.rel target = $region52
            $region51: #{mlp_block.1} parent=43 // pred_region
              %s1022 = ssub.s32 256, 1
              %s1023 = sshrl.u32 %s1009, 5
              // While loop
              $region53: #{mlp_block.1} parent=51 // loop_pre_header
                _
              $region54: #{mlp_block.1} parent=51 // loop_header
                %s1025 = sphi 0, %s1027
                %p1026 = scmp.ge.s32.totalorder %s1025, %s1023
                %s1030 = sphi 0, %s1099
                %s1031 = sphi %s1002, %s1102
                %s1032 = sphi %s1013, %s1103
              $region55: #{mlp_block.1} parent=51 // loop_header_branch
                %1029 = sbr.rel (%p1026) target = $region59
              $region56: #{mlp_block.1} parent=51 // loop_body
                %v1033 = vld [vmem:[%s1031] sm:%s1022]
                %1034 = vst [vmem:[%s1032] sm:%s1022] %v1033
                %v1035 = vld [vmem:[%s1031 + $0x8] sm:%s1022]
                %1036 = vst [vmem:[%s1032 + $0x8] sm:%s1022] %v1035
                %v1037 = vld [vmem:[%s1031 + $0x10] sm:%s1022]
                %1038 = vst [vmem:[%s1032 + $0x10] sm:%s1022] %v1037
                %v1039 = vld [vmem:[%s1031 + $0x18] sm:%s1022]
                %1040 = vst [vmem:[%s1032 + $0x18] sm:%s1022] %v1039
                %v1041 = vld [vmem:[%s1031 + $0x20] sm:%s1022]
                %1042 = vst [vmem:[%s1032 + $0x20] sm:%s1022] %v1041
                %v1043 = vld [vmem:[%s1031 + $0x28] sm:%s1022]
                %1044 = vst [vmem:[%s1032 + $0x28] sm:%s1022] %v1043
                %v1045 = vld [vmem:[%s1031 + $0x30] sm:%s1022]
                %1046 = vst [vmem:[%s1032 + $0x30] sm:%s1022] %v1045
                %v1047 = vld [vmem:[%s1031 + $0x38] sm:%s1022]
                %1048 = vst [vmem:[%s1032 + $0x38] sm:%s1022] %v1047
                %v1049 = vld [vmem:[%s1031 + $0x40] sm:%s1022]
                %1050 = vst [vmem:[%s1032 + $0x40] sm:%s1022] %v1049
                %v1051 = vld [vmem:[%s1031 + $0x48] sm:%s1022]
                %1052 = vst [vmem:[%s1032 + $0x48] sm:%s1022] %v1051
                %v1053 = vld [vmem:[%s1031 + $0x50] sm:%s1022]
                %1054 = vst [vmem:[%s1032 + $0x50] sm:%s1022] %v1053
                %v1055 = vld [vmem:[%s1031 + $0x58] sm:%s1022]
                %1056 = vst [vmem:[%s1032 + $0x58] sm:%s1022] %v1055
                %v1057 = vld [vmem:[%s1031 + $0x60] sm:%s1022]
                %1058 = vst [vmem:[%s1032 + $0x60] sm:%s1022] %v1057
                %v1059 = vld [vmem:[%s1031 + $0x68] sm:%s1022]
                %1060 = vst [vmem:[%s1032 + $0x68] sm:%s1022] %v1059
                %v1061 = vld [vmem:[%s1031 + $0x70] sm:%s1022]
                %1062 = vst [vmem:[%s1032 + $0x70] sm:%s1022] %v1061
                %v1063 = vld [vmem:[%s1031 + $0x78] sm:%s1022]
                %1064 = vst [vmem:[%s1032 + $0x78] sm:%s1022] %v1063
                %v1065 = vld [vmem:[%s1031 + $0x80] sm:%s1022]
                %1066 = vst [vmem:[%s1032 + $0x80] sm:%s1022] %v1065
                %v1067 = vld [vmem:[%s1031 + $0x88] sm:%s1022]
                %1068 = vst [vmem:[%s1032 + $0x88] sm:%s1022] %v1067
                %v1069 = vld [vmem:[%s1031 + $0x90] sm:%s1022]
                %1070 = vst [vmem:[%s1032 + $0x90] sm:%s1022] %v1069
                %v1071 = vld [vmem:[%s1031 + $0x98] sm:%s1022]
                %1072 = vst [vmem:[%s1032 + $0x98] sm:%s1022] %v1071
                %v1073 = vld [vmem:[%s1031 + $0xa0] sm:%s1022]
                %1074 = vst [vmem:[%s1032 + $0xa0] sm:%s1022] %v1073
                %v1075 = vld [vmem:[%s1031 + $0xa8] sm:%s1022]
                %1076 = vst [vmem:[%s1032 + $0xa8] sm:%s1022] %v1075
                %v1077 = vld [vmem:[%s1031 + $0xb0] sm:%s1022]
                %1078 = vst [vmem:[%s1032 + $0xb0] sm:%s1022] %v1077
                %v1079 = vld [vmem:[%s1031 + $0xb8] sm:%s1022]
                %1080 = vst [vmem:[%s1032 + $0xb8] sm:%s1022] %v1079
                %v1081 = vld [vmem:[%s1031 + $0xc0] sm:%s1022]
                %1082 = vst [vmem:[%s1032 + $0xc0] sm:%s1022] %v1081
                %v1083 = vld [vmem:[%s1031 + $0xc8] sm:%s1022]
                %1084 = vst [vmem:[%s1032 + $0xc8] sm:%s1022] %v1083
                %v1085 = vld [vmem:[%s1031 + $0xd0] sm:%s1022]
                %1086 = vst [vmem:[%s1032 + $0xd0] sm:%s1022] %v1085
                %v1087 = vld [vmem:[%s1031 + $0xd8] sm:%s1022]
                %1088 = vst [vmem:[%s1032 + $0xd8] sm:%s1022] %v1087
                %v1089 = vld [vmem:[%s1031 + $0xe0] sm:%s1022]
                %1090 = vst [vmem:[%s1032 + $0xe0] sm:%s1022] %v1089
                %v1091 = vld [vmem:[%s1031 + $0xe8] sm:%s1022]
                %1092 = vst [vmem:[%s1032 + $0xe8] sm:%s1022] %v1091
                %v1093 = vld [vmem:[%s1031 + $0xf0] sm:%s1022]
                %1094 = vst [vmem:[%s1032 + $0xf0] sm:%s1022] %v1093
                %v1095 = vld [vmem:[%s1031 + $0xf8] sm:%s1022]
                %1096 = vst [vmem:[%s1032 + $0xf8] sm:%s1022] %v1095
                %s1097 = sadd.s32 1, %s1030
                %p1098 = scmp.ge.s32.totalorder %s1097, %s1023
                %s1099 = scalar_select %p1098, 0, %s1097
                %s1100 = smul.u32 %s1099, 256
                %s1101 = smul.u32 %s1099, 256
                %s1102 = scalar_lea.vmem %s1002, %s1100 [#allocation2]
                %s1103 = scalar_lea.vmem %s1013, %s1101
              $region57: #{mlp_block.1} parent=51 // loop_footer
                %s1027 = sadd.s32 %s1025, 1
              $region58: #{mlp_block.1} parent=51 // loop_footer_branch
                %1024 = sbr.rel target = $region54
              $region59: #{mlp_block.1} parent=51 // loop_exit
                _
              %s1104 = sshrl.u32 %s1009, 5
              %s1105 = sand.u32 %s1009, 31
              %s1106 = smul.u32 %s1104, 32
              %s1107 = smul.u32 8, %s1106
              %s1108 = scalar_lea.vmem %s1002, %s1107 [#allocation2]
              %s1109 = smul.u32 8, %s1106
              %s1110 = scalar_lea.vmem %s1013, %s1109
              // While loop
              $region60: #{mlp_block.1} parent=51 // loop_pre_header
                _
              $region61: #{mlp_block.1} parent=51 // loop_header
                %s1112 = sphi 0, %s1114
                %p1113 = scmp.ge.s32.totalorder %s1112, %s1105
                %s1117 = sphi 0, %s1124
                %s1118 = sphi %s1108, %s1127
                %s1119 = sphi %s1110, %s1128
              $region62: #{mlp_block.1} parent=51 // loop_header_branch
                %1116 = sbr.rel (%p1113) target = $region66
              $region63: #{mlp_block.1} parent=51 // loop_body
                %v1120 = vld [vmem:[%s1118] sm:%s1022]
                %1121 = vst [vmem:[%s1119] sm:%s1022] %v1120
                %s1122 = sadd.s32 1, %s1117
                %p1123 = scmp.ge.s32.totalorder %s1122, %s1105
                %s1124 = scalar_select %p1123, 0, %s1122
                %s1125 = smul.u32 %s1124, 8
                %s1126 = smul.u32 %s1124, 8
                %s1127 = scalar_lea.vmem %s1108, %s1125 [#allocation2]
                %s1128 = scalar_lea.vmem %s1110, %s1126
              $region64: #{mlp_block.1} parent=51 // loop_footer
                %s1114 = sadd.s32 %s1112, 1
              $region65: #{mlp_block.1} parent=51 // loop_footer_branch
                %1111 = sbr.rel target = $region61
              $region66: #{mlp_block.1} parent=51 // loop_exit
                _
            $region52: #{mlp_block.1} parent=43 // pred_fallthru
              _
          $region44: #{mlp_block.1} parent=39 // pred_fallthru
            _
          %1239 = vnop
        $region40: #{mlp_block.1} parent=35 // pred_fallthru
          _
      $region36: #{mlp_block.1} parent=5 // pred_fallthru
        _
      %p1240 = scmp.le.s32.totalorder 2, %s10
      // Predicated region
      $region89: #{mlp_block.1} parent=5 // pred_check
        %p1241 = pneg %p1240
      $region90: #{mlp_block.1} parent=5 // pred_check_branch
        %1243 = sbr.rel (%p1241) target = $region92
      $region91: #{mlp_block.1} parent=5 // pred_region
        %s1244 = ssub.s32 %s10, 2
        // Predicated region
        $region93: #{mlp_block.1} parent=91 // pred_check
          %p1245 = pneg %p128
        $region94: #{mlp_block.1} parent=91 // pred_check_branch
          %1247 = sbr.rel (%p1245) target = $region96
        $region95: #{mlp_block.1} parent=91 // pred_region
          %s1248 = sand.u32 %s113, 1
          %s1249 = sand.u32 %s113, 1
          %s1250 = smul.addr %s1249, 256
          %s1251 = scalar_lea.vmem [#allocation2], %s1250
        $region96: #{mlp_block.1} parent=91 // pred_fallthru
          _
      $region92: #{mlp_block.1} parent=5 // pred_fallthru
        _
    $region6: #{mlp_block.1} parent=1 // loop_footer
      %s14 = sadd.s32 1, %s10
    $region7: #{mlp_block.1} parent=1 // loop_footer_branch
      %9 = sbr.rel target = $region3
    $region8: #{mlp_block.1} parent=1 // loop_exit
      _

</llo_original>
